<compile_context>
chip_gen: v6e
topology: v6e:2x2x1
jax: 0.10.0
libtpu: 0.0.40
codegen_flags: <defaults>
</compile_context>

<pallas_src>
import jax
import jax.numpy as jnp
from jax.experimental import pallas as pl
from jax.experimental.pallas import tpu as pltpu


def critic_ram_kernel(state_ref, action_ref, w1s_ref, w1a_ref, b1_ref,
                      w2_ref, b2_ref, w3_ref, b3_ref, q_ref):
    mm_dtype = w1s_ref.dtype                   # f32, or bf16 if pre-cast in wrapper
    s = state_ref[...].astype(mm_dtype)        # [TB, S]
    a = action_ref[...].astype(mm_dtype)       # [TB, A]

    # layer 1: Linear(concat(state, action)) fused as two matmuls + bias + ReLU.
    h1 = jnp.dot(s, w1s_ref[...], preferred_element_type=jnp.float32)
    h1 = h1 + jnp.dot(a, w1a_ref[...], preferred_element_type=jnp.float32)
    h1 = jnp.maximum(h1 + b1_ref[...], 0.0)                       # [TB, H] f32

    # layer 2: Linear + ReLU.
    h2 = jnp.dot(h1.astype(mm_dtype), w2_ref[...],
                 preferred_element_type=jnp.float32)
    h2 = jnp.maximum(h2 + b2_ref[...], 0.0)                       # [TB, H] f32

    # layer 3: out_features == 1 -> VPU multiply + lane reduce (skip the MXU).
    q = jnp.sum(h2 * w3_ref[...], axis=-1, keepdims=True)         # [TB, 1] f32
    q_ref[...] = (q + b3_ref[0]).astype(q_ref.dtype)              # scalar bias (SMEM)


def _round_up(x, m):
    return -(-x // m) * m


def _batch_tile(batch, block_b):
    """>=2 grid steps for any non-trivial batch (v7x has 2 TensorCores and the
    'parallel' axis only helps with >=2 iterations); multiple of 8 sublanes;
    capped by block_b."""
    if batch < 16:
        return batch
    return min(block_b, _round_up(pl.cdiv(batch, 2), 8))


def critic_ram_forward(state, action, params, *, block_b=1024,
                       use_bf16_matmul=False):
    """Pallas implementation of Critic_RAM.forward(state, action) -> [B, 1]."""
    w1s, w1a, b1, w2, b2, w3, b3 = params
    B, S = state.shape
    A = action.shape[1]
    H = w2.shape[1]

    # Pre-cast MXU weight operands once (no-op if already bf16).  Activations
    # are cast per tile inside the kernel; biases / w3 / accumulation stay f32.
    if use_bf16_matmul:
        w1s, w1a, w2 = [w if w.dtype == jnp.bfloat16 else w.astype(jnp.bfloat16)
                        for w in (w1s, w1a, w2)]

    tb = _batch_tile(B, block_b)
    grid = (pl.cdiv(B, tb),)

    weight_bytes = sum(int(w.size) * w.dtype.itemsize
                       for w in (w1s, w1a, b1, w2, b2, w3, b3))
    cost = pl.CostEstimate(
        flops=2 * B * (H * (S + A) + H * H + H),
        transcendentals=0,
        bytes_accessed=int(B * (S + A + 1) * 4 + weight_bytes))

    compiler_kwargs = dict(dimension_semantics=("parallel",))
    # Rough worst-case VMEM footprint (everything double-buffered + h1/h2 temps);
    # only raise the scoped limit when a large H actually needs it.
    vmem_est = 2 * weight_bytes + 2 * tb * (S + A + 1) * 4 + 3 * tb * H * 4
    if vmem_est > 24 * (1 << 20):
        compiler_kwargs["vmem_limit_bytes"] = int(min(2 * vmem_est, 64 * (1 << 20)))

    def build(single_buffer_weights):
        def wspec(shape):
            if single_buffer_weights:
                # Grid-invariant resident block: no need for the default
                # double buffer (halves resident weight VMEM; matters on v7x).
                return pl.BlockSpec(shape, lambda i: (0, 0),
                                    pipeline_mode=pl.Buffered(1))
            return pl.BlockSpec(shape, lambda i: (0, 0))

        return pl.pallas_call(
            critic_ram_kernel,
            out_shape=jax.ShapeDtypeStruct((B, 1), jnp.float32),
            grid=grid,
            in_specs=[
                pl.BlockSpec((tb, S), lambda i: (i, 0)),            # state  (tiled)
                pl.BlockSpec((tb, A), lambda i: (i, 0)),            # action (tiled)
                wspec((S, H)),                                      # w1[:S] (resident)
                wspec((A, H)),                                      # w1[S:] (resident)
                wspec((1, H)),                                      # b1
                wspec((H, H)),                                      # w2
                wspec((1, H)),                                      # b2
                wspec((1, H)),                                      # w3 (row vector)
                pl.BlockSpec(memory_space=pltpu.MemorySpace.SMEM),  # b3 scalar
            ],
            out_specs=pl.BlockSpec((tb, 1), lambda i: (i, 0)),
            compiler_params=pltpu.CompilerParams(**compiler_kwargs),
            cost_estimate=cost,
        )

    args = (state, action, w1s, w1a, b1, w2, b2, w3, b3)
    try:
        return build(True)(*args)
    except Exception:
        # pipeline_mode=pl.Buffered(1) not supported by this jax build; fall
        # back to default (double-buffered) resident weight blocks.
        return build(False)(*args)


def init_params(key, state_dim, action_dim, hidden_size):
    """nn.Linear-style init. Weights stored as (in, out) (transpose of PyTorch);
    w1 pre-split into state/action halves; w3 as a (1, H) row; b3 as (1,)."""
    ks = jax.random.split(key, 6)
    in1 = state_dim + action_dim

    def uinit(k, fan_in, shape):
        bound = 1.0 / jnp.sqrt(fan_in)
        return jax.random.uniform(k, shape, jnp.float32, -bound, bound)

    w1 = uinit(ks[0], in1, (in1, hidden_size))
    w1s, w1a = w1[:state_dim], w1[state_dim:]
    b1 = uinit(ks[1], in1, (1, hidden_size))
    w2 = uinit(ks[2], hidden_size, (hidden_size, hidden_size))
    b2 = uinit(ks[3], hidden_size, (1, hidden_size))
    w3 = uinit(ks[4], hidden_size, (1, hidden_size))   # row vector
    b3 = uinit(ks[5], hidden_size, (1,))               # scalar
    return (w1s, w1a, b1, w2, b2, w3, b3)


def critic_ram_reference(state, action, params):
    """Pure-JAX reference mirroring the PyTorch forward."""
    w1s, w1a, b1, w2, b2, w3, b3 = params
    sa = jnp.concatenate([state, action], axis=1)
    w1 = jnp.concatenate([w1s, w1a], axis=0)
    q = jnp.maximum(sa @ w1 + b1, 0.0)
    q = jnp.maximum(q @ w2 + b2, 0.0)
    q = q @ w3.T + b3
    return q


if __name__ == "__main__":
    # Small shapes consistent with the module.
    batch, state_dim, action_dim, hidden_size = 2, 16, 8, 32

    key = jax.random.PRNGKey(0)
    k_state, k_action, k_params = jax.random.split(key, 3)

    state = jax.random.normal(k_state, (batch, state_dim), jnp.float32)
    action = jax.random.normal(k_action, (batch, action_dim), jnp.float32)
    params = init_params(k_params, state_dim, action_dim, hidden_size)

    q = jax.block_until_ready(critic_ram_forward(state, action, params))
    q_ref = critic_ram_reference(state, action, params)
    assert q.shape == (batch, 1)
    assert jnp.allclose(q, q_ref, atol=1e-5, rtol=1e-5)

    # Multi-step grids (>=2 steps so v7x's two TCs can split the batch) and
    # ragged batches handled by Pallas partial-last-block clipping (no host
    # pad / slice round-trips).
    for b_big, blk in ((48, 1024), (20, 16), (10, 1024), (300, 1024)):
        kb = jax.random.fold_in(key, b_big)
        st = jax.random.normal(kb, (b_big, state_dim), jnp.float32)
        ac = jax.random.normal(jax.random.fold_in(kb, 1),
                               (b_big, action_dim), jnp.float32)
        qb = jax.block_until_ready(
            critic_ram_forward(st, ac, params, block_b=blk))
        assert qb.shape == (b_big, 1)
        assert jnp.allclose(qb, critic_ram_reference(st, ac, params),
                            atol=1e-5, rtol=1e-5)

    # bf16 MXU path: weights pre-cast once in the wrapper, f32 accumulation and
    # f32 elementwise math (intentional precision trade-off -> loose tolerance).
    q16 = jax.block_until_ready(
        critic_ram_forward(state, action, params, use_bf16_matmul=True))
    assert q16.shape == (batch, 1)
    assert jnp.allclose(q16, q_ref, atol=1e-1, rtol=5e-2)

    print("KERNEL_OK")
</pallas_src>

<mosaic_0001>
module attributes {stable_mosaic.version = 11 : i64} {
  func.func @critic_ram_kernel(%arg0: i32, %arg1: memref<2x16xf32, #tpu.memory_space<vmem>>, %arg2: memref<2x8xf32, #tpu.memory_space<vmem>>, %arg3: memref<16x32xf32, #tpu.memory_space<vmem>>, %arg4: memref<8x32xf32, #tpu.memory_space<vmem>>, %arg5: memref<1x32xf32, #tpu.memory_space<vmem>>, %arg6: memref<32x32xf32, #tpu.memory_space<vmem>>, %arg7: memref<1x32xf32, #tpu.memory_space<vmem>>, %arg8: memref<1x32xf32, #tpu.memory_space<vmem>>, %arg9: memref<1xf32, #tpu.memory_space<smem>>, %arg10: memref<2x1xf32, #tpu.memory_space<vmem>>) attributes {dimension_semantics = [#tpu.dimension_semantics<parallel>], iteration_bounds = array<i64: 1>, scalar_prefetch = 0 : i64, scratch_operands = 0 : i64, tpu.core_type = #tpu.core_type<tc>, window_params = [{transform_indices = @transform_0, window_bounds = array<i64: 2, 16>}, {transform_indices = @transform_1, window_bounds = array<i64: 2, 8>}, {pipeline_mode = #tpu.pipeline_mode<synchronous>, transform_indices = @transform_2, window_bounds = array<i64: 16, 32>}, {pipeline_mode = #tpu.pipeline_mode<synchronous>, transform_indices = @transform_3, window_bounds = array<i64: 8, 32>}, {pipeline_mode = #tpu.pipeline_mode<synchronous>, transform_indices = @transform_4, window_bounds = array<i64: 1, 32>}, {pipeline_mode = #tpu.pipeline_mode<synchronous>, transform_indices = @transform_5, window_bounds = array<i64: 32, 32>}, {pipeline_mode = #tpu.pipeline_mode<synchronous>, transform_indices = @transform_6, window_bounds = array<i64: 1, 32>}, {pipeline_mode = #tpu.pipeline_mode<synchronous>, transform_indices = @transform_7, window_bounds = array<i64: 1, 32>}, {transform_indices = @transform_8, window_bounds = array<i64: 1>}, {transform_indices = @transform_9, window_bounds = array<i64: 2, 1>}]} {
    %c0 = arith.constant 0 : index
    %c0_0 = arith.constant 0 : index
    %0 = vector.load %arg1[%c0, %c0_0] : memref<2x16xf32, #tpu.memory_space<vmem>>, vector<2x16xf32>
    %c0_1 = arith.constant 0 : index
    %c0_2 = arith.constant 0 : index
    %1 = vector.load %arg2[%c0_1, %c0_2] : memref<2x8xf32, #tpu.memory_space<vmem>>, vector<2x8xf32>
    %c0_3 = arith.constant 0 : index
    %c0_4 = arith.constant 0 : index
    %2 = vector.load %arg3[%c0_3, %c0_4] : memref<16x32xf32, #tpu.memory_space<vmem>>, vector<16x32xf32>
    %cst = arith.constant dense<0.000000e+00> : vector<2x32xf32>
    %3 = tpu.matmul %0, %2, %cst {dimension_numbers = #tpu.dot_dimension_numbers<[1], [0], [0], [1], [0, 0, 1, 1], [], []>} : vector<2x16xf32>, vector<16x32xf32>, vector<2x32xf32> -> vector<2x32xf32>
    %c0_5 = arith.constant 0 : index
    %c0_6 = arith.constant 0 : index
    %4 = vector.load %arg4[%c0_5, %c0_6] : memref<8x32xf32, #tpu.memory_space<vmem>>, vector<8x32xf32>
    %cst_7 = arith.constant dense<0.000000e+00> : vector<2x32xf32>
    %5 = tpu.matmul %1, %4, %cst_7 {dimension_numbers = #tpu.dot_dimension_numbers<[1], [0], [0], [1], [0, 0, 1, 1], [], []>} : vector<2x8xf32>, vector<8x32xf32>, vector<2x32xf32> -> vector<2x32xf32>
    %6 = arith.addf %3, %5 : vector<2x32xf32>
    %c0_8 = arith.constant 0 : index
    %c0_9 = arith.constant 0 : index
    %7 = vector.load %arg5[%c0_8, %c0_9] : memref<1x32xf32, #tpu.memory_space<vmem>>, vector<1x32xf32>
    %8 = vector.broadcast %7 : vector<1x32xf32> to vector<2x32xf32>
    %9 = arith.addf %6, %8 : vector<2x32xf32>
    %cst_10 = arith.constant 0.000000e+00 : f32
    %10 = vector.broadcast %cst_10 : f32 to vector<2x32xf32>
    %11 = arith.maximumf %9, %10 : vector<2x32xf32>
    %c0_11 = arith.constant 0 : index
    %c0_12 = arith.constant 0 : index
    %12 = vector.load %arg6[%c0_11, %c0_12] : memref<32x32xf32, #tpu.memory_space<vmem>>, vector<32x32xf32>
    %cst_13 = arith.constant dense<0.000000e+00> : vector<2x32xf32>
    %13 = tpu.matmul %11, %12, %cst_13 {dimension_numbers = #tpu.dot_dimension_numbers<[1], [0], [0], [1], [0, 0, 1, 1], [], []>} : vector<2x32xf32>, vector<32x32xf32>, vector<2x32xf32> -> vector<2x32xf32>
    %c0_14 = arith.constant 0 : index
    %c0_15 = arith.constant 0 : index
    %14 = vector.load %arg7[%c0_14, %c0_15] : memref<1x32xf32, #tpu.memory_space<vmem>>, vector<1x32xf32>
    %15 = vector.broadcast %14 : vector<1x32xf32> to vector<2x32xf32>
    %16 = arith.addf %13, %15 : vector<2x32xf32>
    %cst_16 = arith.constant 0.000000e+00 : f32
    %17 = vector.broadcast %cst_16 : f32 to vector<2x32xf32>
    %18 = arith.maximumf %16, %17 : vector<2x32xf32>
    %c0_17 = arith.constant 0 : index
    %c0_18 = arith.constant 0 : index
    %19 = vector.load %arg8[%c0_17, %c0_18] : memref<1x32xf32, #tpu.memory_space<vmem>>, vector<1x32xf32>
    %20 = vector.broadcast %19 : vector<1x32xf32> to vector<2x32xf32>
    %21 = arith.mulf %18, %20 : vector<2x32xf32>
    %cst_19 = arith.constant dense<0.000000e+00> : vector<2xf32>
    %22 = vector.multi_reduction <add>, %21, %cst_19 [1] : vector<2x32xf32> to vector<2xf32>
    %23 = vector.shape_cast %22 : vector<2xf32> to vector<2x1xf32>
    %c0_20 = arith.constant 0 : index
    %24 = memref.load %arg9[%c0_20] : memref<1xf32, #tpu.memory_space<smem>>
    %25 = vector.broadcast %24 : f32 to vector<2x1xf32>
    %26 = arith.addf %23, %25 : vector<2x1xf32>
    %c0_21 = arith.constant 0 : index
    %c0_22 = arith.constant 0 : index
    %27 = vector.load %arg10[%c0_21, %c0_22] : memref<2x1xf32, #tpu.memory_space<vmem>>, vector<2x1xf32>
    tpu.vector_store %arg10[%c0_21, %c0_22], %26 {strides = array<i32>} : memref<2x1xf32, #tpu.memory_space<vmem>>, vector<2x1xf32>,
    return
  }
  func.func @transform_0(%arg0: i32) -> (i32, i32) {
    %c0_i32 = arith.constant 0 : i32
    %c0_i32_0 = arith.constant 0 : i32
    return %arg0, %c0_i32 : i32, i32
  }
  func.func @transform_1(%arg0: i32) -> (i32, i32) {
    %c0_i32 = arith.constant 0 : i32
    %c0_i32_0 = arith.constant 0 : i32
    return %arg0, %c0_i32 : i32, i32
  }
  func.func @transform_2(%arg0: i32) -> (i32, i32) {
    %c0_i32 = arith.constant 0 : i32
    %c0_i32_0 = arith.constant 0 : i32
    %c0_i32_1 = arith.constant 0 : i32
    return %c0_i32, %c0_i32_0 : i32, i32
  }
  func.func @transform_3(%arg0: i32) -> (i32, i32) {
    %c0_i32 = arith.constant 0 : i32
    %c0_i32_0 = arith.constant 0 : i32
    %c0_i32_1 = arith.constant 0 : i32
    return %c0_i32, %c0_i32_0 : i32, i32
  }
  func.func @transform_4(%arg0: i32) -> (i32, i32) {
    %c0_i32 = arith.constant 0 : i32
    %c0_i32_0 = arith.constant 0 : i32
    %c0_i32_1 = arith.constant 0 : i32
    return %c0_i32, %c0_i32_0 : i32, i32
  }
  func.func @transform_5(%arg0: i32) -> (i32, i32) {
    %c0_i32 = arith.constant 0 : i32
    %c0_i32_0 = arith.constant 0 : i32
    %c0_i32_1 = arith.constant 0 : i32
    return %c0_i32, %c0_i32_0 : i32, i32
  }
  func.func @transform_6(%arg0: i32) -> (i32, i32) {
    %c0_i32 = arith.constant 0 : i32
    %c0_i32_0 = arith.constant 0 : i32
    %c0_i32_1 = arith.constant 0 : i32
    return %c0_i32, %c0_i32_0 : i32, i32
  }
  func.func @transform_7(%arg0: i32) -> (i32, i32) {
    %c0_i32 = arith.constant 0 : i32
    %c0_i32_0 = arith.constant 0 : i32
    %c0_i32_1 = arith.constant 0 : i32
    return %c0_i32, %c0_i32_0 : i32, i32
  }
  func.func @transform_8(%arg0: i32) -> i32 {
    %c0_i32 = arith.constant 0 : i32
    %c0_i32_0 = arith.constant 0 : i32
    return %c0_i32 : i32
  }
  func.func @transform_9(%arg0: i32) -> (i32, i32) {
    %c0_i32 = arith.constant 0 : i32
    %c0_i32_0 = arith.constant 0 : i32
    return %arg0, %c0_i32 : i32, i32
  }
}

module attributes {stable_mosaic.version = 11 : i64} {
  func.func @critic_ram_kernel(%arg0: i32, %arg1: memref<2x16xf32, #tpu.memory_space<vmem>>, %arg2: memref<2x8xf32, #tpu.memory_space<vmem>>, %arg3: memref<16x32xf32, #tpu.memory_space<vmem>>, %arg4: memref<8x32xf32, #tpu.memory_space<vmem>>, %arg5: memref<1x32xf32, #tpu.memory_space<vmem>>, %arg6: memref<32x32xf32, #tpu.memory_space<vmem>>, %arg7: memref<1x32xf32, #tpu.memory_space<vmem>>, %arg8: memref<1x32xf32, #tpu.memory_space<vmem>>, %arg9: memref<1xf32, #tpu.memory_space<smem>>, %arg10: memref<2x1xf32, #tpu.memory_space<vmem>>) attributes {dimension_semantics = [#tpu.dimension_semantics<parallel>], iteration_bounds = array<i64: 1>, scalar_prefetch = 0 : i64, scratch_operands = 0 : i64, tpu.core_type = #tpu.core_type<tc>, window_params = [{transform_indices = @transform_0, window_bounds = array<i64: 2, 16>}, {transform_indices = @transform_1, window_bounds = array<i64: 2, 8>}, {pipeline_mode = #tpu.pipeline_mode<synchronous>, transform_indices = @transform_2, window_bounds = array<i64: 16, 32>}, {pipeline_mode = #tpu.pipeline_mode<synchronous>, transform_indices = @transform_3, window_bounds = array<i64: 8, 32>}, {pipeline_mode = #tpu.pipeline_mode<synchronous>, transform_indices = @transform_4, window_bounds = array<i64: 1, 32>}, {pipeline_mode = #tpu.pipeline_mode<synchronous>, transform_indices = @transform_5, window_bounds = array<i64: 32, 32>}, {pipeline_mode = #tpu.pipeline_mode<synchronous>, transform_indices = @transform_6, window_bounds = array<i64: 1, 32>}, {pipeline_mode = #tpu.pipeline_mode<synchronous>, transform_indices = @transform_7, window_bounds = array<i64: 1, 32>}, {transform_indices = @transform_8, window_bounds = array<i64: 1>}, {transform_indices = @transform_9, window_bounds = array<i64: 2, 1>}]} {
    %c0 = arith.constant 0 : index
    %c0_0 = arith.constant 0 : index
    %0 = vector.load %arg1[%c0, %c0_0] : memref<2x16xf32, #tpu.memory_space<vmem>>, vector<2x16xf32>
    %c0_1 = arith.constant 0 : index
    %c0_2 = arith.constant 0 : index
    %1 = vector.load %arg2[%c0_1, %c0_2] : memref<2x8xf32, #tpu.memory_space<vmem>>, vector<2x8xf32>
    %c0_3 = arith.constant 0 : index
    %c0_4 = arith.constant 0 : index
    %2 = vector.load %arg3[%c0_3, %c0_4] : memref<16x32xf32, #tpu.memory_space<vmem>>, vector<16x32xf32>
    %cst = arith.constant dense<0.000000e+00> : vector<2x32xf32>
    %3 = tpu.matmul %0, %2, %cst {dimension_numbers = #tpu.dot_dimension_numbers<[1], [0], [0], [1], [0, 0, 1, 1], [], []>} : vector<2x16xf32>, vector<16x32xf32>, vector<2x32xf32> -> vector<2x32xf32>
    %c0_5 = arith.constant 0 : index
    %c0_6 = arith.constant 0 : index
    %4 = vector.load %arg4[%c0_5, %c0_6] : memref<8x32xf32, #tpu.memory_space<vmem>>, vector<8x32xf32>
    %cst_7 = arith.constant dense<0.000000e+00> : vector<2x32xf32>
    %5 = tpu.matmul %1, %4, %cst_7 {dimension_numbers = #tpu.dot_dimension_numbers<[1], [0], [0], [1], [0, 0, 1, 1], [], []>} : vector<2x8xf32>, vector<8x32xf32>, vector<2x32xf32> -> vector<2x32xf32>
    %6 = arith.addf %3, %5 : vector<2x32xf32>
    %c0_8 = arith.constant 0 : index
    %c0_9 = arith.constant 0 : index
    %7 = vector.load %arg5[%c0_8, %c0_9] : memref<1x32xf32, #tpu.memory_space<vmem>>, vector<1x32xf32>
    %8 = vector.broadcast %7 : vector<1x32xf32> to vector<2x32xf32>
    %9 = arith.addf %6, %8 : vector<2x32xf32>
    %cst_10 = arith.constant 0.000000e+00 : f32
    %10 = vector.broadcast %cst_10 : f32 to vector<2x32xf32>
    %11 = arith.maximumf %9, %10 : vector<2x32xf32>
    %c0_11 = arith.constant 0 : index
    %c0_12 = arith.constant 0 : index
    %12 = vector.load %arg6[%c0_11, %c0_12] : memref<32x32xf32, #tpu.memory_space<vmem>>, vector<32x32xf32>
    %cst_13 = arith.constant dense<0.000000e+00> : vector<2x32xf32>
    %13 = tpu.matmul %11, %12, %cst_13 {dimension_numbers = #tpu.dot_dimension_numbers<[1], [0], [0], [1], [0, 0, 1, 1], [], []>} : vector<2x32xf32>, vector<32x32xf32>, vector<2x32xf32> -> vector<2x32xf32>
    %c0_14 = arith.constant 0 : index
    %c0_15 = arith.constant 0 : index
    %14 = vector.load %arg7[%c0_14, %c0_15] : memref<1x32xf32, #tpu.memory_space<vmem>>, vector<1x32xf32>
    %15 = vector.broadcast %14 : vector<1x32xf32> to vector<2x32xf32>
    %16 = arith.addf %13, %15 : vector<2x32xf32>
    %cst_16 = arith.constant 0.000000e+00 : f32
    %17 = vector.broadcast %cst_16 : f32 to vector<2x32xf32>
    %18 = arith.maximumf %16, %17 : vector<2x32xf32>
    %c0_17 = arith.constant 0 : index
    %c0_18 = arith.constant 0 : index
    %19 = vector.load %arg8[%c0_17, %c0_18] : memref<1x32xf32, #tpu.memory_space<vmem>>, vector<1x32xf32>
    %20 = vector.broadcast %19 : vector<1x32xf32> to vector<2x32xf32>
    %21 = arith.mulf %18, %20 : vector<2x32xf32>
    %cst_19 = arith.constant dense<0.000000e+00> : vector<2xf32>
    %22 = vector.multi_reduction <add>, %21, %cst_19 [1] : vector<2x32xf32> to vector<2xf32>
    %23 = vector.shape_cast %22 : vector<2xf32> to vector<2x1xf32>
    %c0_20 = arith.constant 0 : index
    %24 = memref.load %arg9[%c0_20] : memref<1xf32, #tpu.memory_space<smem>>
    %25 = vector.broadcast %24 : f32 to vector<2x1xf32>
    %26 = arith.addf %23, %25 : vector<2x1xf32>
    %c0_21 = arith.constant 0 : index
    %c0_22 = arith.constant 0 : index
    %27 = vector.load %arg10[%c0_21, %c0_22] : memref<2x1xf32, #tpu.memory_space<vmem>>, vector<2x1xf32>
    tpu.vector_store %arg10[%c0_21, %c0_22], %26 {strides = array<i32>} : memref<2x1xf32, #tpu.memory_space<vmem>>, vector<2x1xf32>,
    return
  }
  func.func @transform_0(%arg0: i32) -> (i32, i32) {
    %c0_i32 = arith.constant 0 : i32
    %c0_i32_0 = arith.constant 0 : i32
    return %arg0, %c0_i32 : i32, i32
  }
  func.func @transform_1(%arg0: i32) -> (i32, i32) {
    %c0_i32 = arith.constant 0 : i32
    %c0_i32_0 = arith.constant 0 : i32
    return %arg0, %c0_i32 : i32, i32
  }
  func.func @transform_2(%arg0: i32) -> (i32, i32) {
    %c0_i32 = arith.constant 0 : i32
    %c0_i32_0 = arith.constant 0 : i32
    %c0_i32_1 = arith.constant 0 : i32
    return %c0_i32, %c0_i32_0 : i32, i32
  }
  func.func @transform_3(%arg0: i32) -> (i32, i32) {
    %c0_i32 = arith.constant 0 : i32
    %c0_i32_0 = arith.constant 0 : i32
    %c0_i32_1 = arith.constant 0 : i32
    return %c0_i32, %c0_i32_0 : i32, i32
  }
  func.func @transform_4(%arg0: i32) -> (i32, i32) {
    %c0_i32 = arith.constant 0 : i32
    %c0_i32_0 = arith.constant 0 : i32
    %c0_i32_1 = arith.constant 0 : i32
    return %c0_i32, %c0_i32_0 : i32, i32
  }
  func.func @transform_5(%arg0: i32) -> (i32, i32) {
    %c0_i32 = arith.constant 0 : i32
    %c0_i32_0 = arith.constant 0 : i32
    %c0_i32_1 = arith.constant 0 : i32
    return %c0_i32, %c0_i32_0 : i32, i32
  }
  func.func @transform_6(%arg0: i32) -> (i32, i32) {
    %c0_i32 = arith.constant 0 : i32
    %c0_i32_0 = arith.constant 0 : i32
    %c0_i32_1 = arith.constant 0 : i32
    return %c0_i32, %c0_i32_0 : i32, i32
  }
  func.func @transform_7(%arg0: i32) -> (i32, i32) {
    %c0_i32 = arith.constant 0 : i32
    %c0_i32_0 = arith.constant 0 : i32
    %c0_i32_1 = arith.constant 0 : i32
    return %c0_i32, %c0_i32_0 : i32, i32
  }
  func.func @transform_8(%arg0: i32) -> i32 {
    %c0_i32 = arith.constant 0 : i32
    %c0_i32_0 = arith.constant 0 : i32
    return %c0_i32 : i32
  }
  func.func @transform_9(%arg0: i32) -> (i32, i32) {
    %c0_i32 = arith.constant 0 : i32
    %c0_i32_0 = arith.constant 0 : i32
    return %arg0, %c0_i32 : i32, i32
  }
}

</mosaic_0001>

<llo_original>
// kernel: tpu_custom_call.1
$region0: #{tpu_custom_call.1}
  #allocation0 [shape = 'u32[]', space=smem, size = 0x4, offset = 0x4, fixed_abs, tag = 'smem constant byte address 0x4 - core index']
  #allocation1 [shape = 'u32[144,128]{1,0:T(1,128)}', space=vmem, size = 0x12000, scoped, tag = 'internal scratch']
  #allocation2 [shape = 'f32[1]{0:T(128)S(6)}', space=smem, size = 0x200, scoped, tag = 'scoped memory for tpu_custom_call.1']
  %s0 = inlined_call_operand.vmem [shape: f32[2,16], index: 0, kind: input, shape index: {}]
  %s1 = inlined_call_operand.hbm [shape: f32[2,8], index: 1, kind: input, shape index: {}]
  %s2 = inlined_call_operand.hbm [shape: f32[16,32], index: 2, kind: input, shape index: {}]
  %s3 = inlined_call_operand.hbm [shape: f32[8,32], index: 3, kind: input, shape index: {}]
  %s4 = inlined_call_operand.vmem [shape: f32[1,32], index: 4, kind: input, shape index: {}]
  %s5 = inlined_call_operand.hbm [shape: f32[32,32], index: 5, kind: input, shape index: {}]
  %s6 = inlined_call_operand.vmem [shape: f32[1,32], index: 6, kind: input, shape index: {}]
  %s7 = inlined_call_operand.vmem [shape: f32[1,32], index: 7, kind: input, shape index: {}]
  %s8 = inlined_call_operand.<no memory space> [shape: f32[1], index: 8, kind: input, shape index: {}]
  %s9 = inlined_call_operand.vmem [shape: f32[2,1], index: 9, kind: output, shape index: {}]
  %s10 = sld [smem:[#allocation0]]
  $region62: #{tpu_custom_call.1} parent=0
    _
  %s12 = ssub.s32 1, %s10
  %s13 = scalar_select 0, %s12, %s10
  %14 = sst [smem:[#allocation2]] %s8
  $region1: #{tpu_custom_call.1} parent=0
    #allocation3 [shape = 'u8[1024]{0}', space=vmem, size = 0x400, scoped, tag = 'input window, operand 1, single buffered']
    #allocation4 [shape = 's32[1]{0}', space=sflag, size = 0x4, scoped, tag = 'scoped memory for tpu_custom_call.1']
    #allocation5 [shape = 'u8[8192]{0}', space=vmem, size = 0x2000, scoped, tag = 'input window, operand 2, single buffered']
    #allocation6 [shape = 's32[1]{0}', space=sflag, size = 0x4, scoped, tag = 'scoped memory for tpu_custom_call.1']
    #allocation7 [shape = 'u8[4096]{0}', space=vmem, size = 0x1000, scoped, tag = 'input window, operand 3, single buffered']
    #allocation8 [shape = 'u8[16384]{0}', space=vmem, size = 0x4000, scoped, tag = 'input window, operand 5, single buffered']
    #allocation9 [shape = 's32[1]{0}', space=sflag, size = 0x4, scoped, tag = 'scoped memory for tpu_custom_call.1']
    %15 = vsyncpa [#allocation4], 0
    %16 = vsyncpa [#allocation6], 0
    %17 = vsyncpa [#allocation9], 0
    // Predicated region
    $region2: #{tpu_custom_call.1} parent=1 // pred_check
      _
    $region3: #{tpu_custom_call.1} parent=1 // pred_check_branch
      %19 = sbr.rel (0) target = $region5
    $region4: #{tpu_custom_call.1} parent=1 // pred_region
      _
    $region5: #{tpu_custom_call.1} parent=1 // pred_fallthru
      _
    // Predicated region
    $region6: #{tpu_custom_call.1} parent=1 // pred_check
      _
    $region7: #{tpu_custom_call.1} parent=1 // pred_check_branch
      %21 = sbr.rel (0) target = $region9
    $region8: #{tpu_custom_call.1} parent=1 // pred_region
      %s23 = ssub.s32 32, 32
      %24 = vsyncadd [#allocation4], %s23
      %s26 = sshll.u32 [#allocation3], 4
      %s27 = int_to_ptr.vmem [resolvable:$true] %s26
      %29 = dma.hbm_to_vmem [thread:$0]  %s1, 32, %s27, [#allocation4]
    $region9: #{tpu_custom_call.1} parent=1 // pred_fallthru
      _
    // Predicated region
    $region10: #{tpu_custom_call.1} parent=1 // pred_check
      _
    $region11: #{tpu_custom_call.1} parent=1 // pred_check_branch
      %31 = sbr.rel (0) target = $region13
    $region12: #{tpu_custom_call.1} parent=1 // pred_region
      %s33 = ssub.s32 256, 256
      %34 = vsyncadd [#allocation6], %s33
      %s35 = sshll.u32 [#allocation5], 4
      %s36 = int_to_ptr.vmem [resolvable:$true] %s35
      %41 = dma.hbm_to_vmem [thread:$0]  %s2, 256, %s36, [#allocation6], 128, 128, 8
    $region13: #{tpu_custom_call.1} parent=1 // pred_fallthru
      _
    // Predicated region
    $region14: #{tpu_custom_call.1} parent=1 // pred_check
      _
    $region15: #{tpu_custom_call.1} parent=1 // pred_check_branch
      %43 = sbr.rel (0) target = $region17
    $region16: #{tpu_custom_call.1} parent=1 // pred_region
      %s45 = ssub.s32 128, 128
      %46 = vsyncadd [#allocation6], %s45
      %s48 = sshll.u32 [#allocation7], 4
      %s49 = int_to_ptr.vmem [resolvable:$true] %s48
      %51 = dma.hbm_to_vmem [thread:$0]  %s3, 128, %s49, [#allocation6]
    $region17: #{tpu_custom_call.1} parent=1 // pred_fallthru
      _
    // Predicated region
    $region18: #{tpu_custom_call.1} parent=1 // pred_check
      _
    $region19: #{tpu_custom_call.1} parent=1 // pred_check_branch
      %53 = sbr.rel (0) target = $region21
    $region20: #{tpu_custom_call.1} parent=1 // pred_region
      _
    $region21: #{tpu_custom_call.1} parent=1 // pred_fallthru
      _
    // Predicated region
    $region22: #{tpu_custom_call.1} parent=1 // pred_check
      _
    $region23: #{tpu_custom_call.1} parent=1 // pred_check_branch
      %55 = sbr.rel (0) target = $region25
    $region24: #{tpu_custom_call.1} parent=1 // pred_region
      %s57 = ssub.s32 512, 512
      %58 = vsyncadd [#allocation9], %s57
      %s59 = sshll.u32 [#allocation8], 4
      %s60 = int_to_ptr.vmem [resolvable:$true] %s59
      %65 = dma.hbm_to_vmem [thread:$0]  %s5, 512, %s60, [#allocation9], 128, 128, 8
    $region25: #{tpu_custom_call.1} parent=1 // pred_fallthru
      _
    // Predicated region
    $region26: #{tpu_custom_call.1} parent=1 // pred_check
      _
    $region27: #{tpu_custom_call.1} parent=1 // pred_check_branch
      %67 = sbr.rel (0) target = $region29
    $region28: #{tpu_custom_call.1} parent=1 // pred_region
      _
    $region29: #{tpu_custom_call.1} parent=1 // pred_fallthru
      _
    // Predicated region
    $region30: #{tpu_custom_call.1} parent=1 // pred_check
      _
    $region31: #{tpu_custom_call.1} parent=1 // pred_check_branch
      %69 = sbr.rel (0) target = $region33
    $region32: #{tpu_custom_call.1} parent=1 // pred_region
      _
    $region33: #{tpu_custom_call.1} parent=1 // pred_fallthru
      _
    // Predicated region
    $region34: #{tpu_custom_call.1} parent=1 // pred_check
      _
    $region35: #{tpu_custom_call.1} parent=1 // pred_check_branch
      %71 = sbr.rel (0) target = $region37
    $region36: #{tpu_custom_call.1} parent=1 // pred_region
      _
    $region37: #{tpu_custom_call.1} parent=1 // pred_fallthru
      _
    // Predicated region
    $region38: #{tpu_custom_call.1} parent=1 // pred_check
      _
    $region39: #{tpu_custom_call.1} parent=1 // pred_check_branch
      %73 = sbr.rel (0) target = $region41
    $region40: #{tpu_custom_call.1} parent=1 // pred_region
      %74 = dma.done [#allocation4], 32
    $region41: #{tpu_custom_call.1} parent=1 // pred_fallthru
      _
    // Predicated region
    $region42: #{tpu_custom_call.1} parent=1 // pred_check
      _
    $region43: #{tpu_custom_call.1} parent=1 // pred_check_branch
      %76 = sbr.rel (0) target = $region45
    $region44: #{tpu_custom_call.1} parent=1 // pred_region
      %77 = dma.done [#allocation6], 256
    $region45: #{tpu_custom_call.1} parent=1 // pred_fallthru
      _
    // Predicated region
    $region46: #{tpu_custom_call.1} parent=1 // pred_check
      _
    $region47: #{tpu_custom_call.1} parent=1 // pred_check_branch
      %79 = sbr.rel (0) target = $region49
    $region48: #{tpu_custom_call.1} parent=1 // pred_region
      %80 = dma.done [#allocation6], 128
    $region49: #{tpu_custom_call.1} parent=1 // pred_fallthru
      _
    // Predicated region
    $region50: #{tpu_custom_call.1} parent=1 // pred_check
      _
    $region51: #{tpu_custom_call.1} parent=1 // pred_check_branch
      %82 = sbr.rel (0) target = $region53
    $region52: #{tpu_custom_call.1} parent=1 // pred_region
      %83 = dma.done [#allocation9], 512
    $region53: #{tpu_custom_call.1} parent=1 // pred_fallthru
      _
    %v84 = vld [vmem:[%s0] sm:$0x3]
    %v85 = vld [vmem:[#allocation3] sm:$0x3]
    %v86 = vld [vmem:[#allocation5] sm:$0xff]
    %v87 = vld [vmem:[#allocation5 + $0x8] sm:$0xff]
    %v88 = vld [vmem:[#allocation7] sm:$0xff]
    %vm89 = vcmask 64512
    %v91 = vsel %vm89, %v85, 0
    %93 = vmatprep.subr.mxu0 0.0
    %94 = vmatpush1.msra.mxu0 0.0
    %95 = vmatprep.subr.mxu0 0.0
    %96 = vmatpush1.msra.mxu0 0.0
    %97 = vmatprep.subr.mxu0 0.0
    %98 = vmatpush1.msra.mxu0 0.0
    %99 = vmatprep.subr.mxu0 0.0
    %100 = vmatpush1.msra.mxu0 0.0
    %101 = vmatprep.subr.mxu0 0.0
    %102 = vmatpush1.msra.mxu0 0.0
    %103 = vmatprep.subr.mxu0 0.0
    %104 = vmatpush1.msra.mxu0 0.0
    %105 = vmatprep.subr.mxu0 0.0
    %106 = vmatpush1.msra.mxu0 0.0
    %107 = vmatprep.subr.mxu0 0.0
    %108 = vmatpush1.msra.mxu0 0.0
    %109 = vmatprep.subr.mxu0 0.0
    %110 = vmatpush1.msra.mxu0 0.0
    %111 = vmatprep.subr.mxu0 0.0
    %112 = vmatpush1.msra.mxu0 0.0
    %113 = vmatprep.subr.mxu0 0.0
    %114 = vmatpush1.msra.mxu0 0.0
    %115 = vmatprep.subr.mxu0 0.0
    %116 = vmatpush1.msra.mxu0 0.0
    %117 = vmatprep.subr.mxu0 0.0
    %118 = vmatpush1.msra.mxu0 0.0
    %119 = vmatprep.subr.mxu0 0.0
    %120 = vmatpush1.msra.mxu0 0.0
    %121 = vmatprep.subr.mxu0 0.0
    %122 = vmatpush1.msra.mxu0 0.0
    %123 = vmatprep.subr.mxu0 0.0
    %124 = vmatpush1.msra.mxu0 %v88
    %125 = vmatprep.subr.mxu0 0.0
    %126 = vmatpush2.msra.mxu0 0.0
    %127 = vmatprep.subr.mxu0 0.0
    %128 = vmatpush2.msra.mxu0 0.0
    %129 = vmatprep.subr.mxu0 0.0
    %130 = vmatpush2.msra.mxu0 0.0
    %131 = vmatprep.subr.mxu0 0.0
    %132 = vmatpush2.msra.mxu0 0.0
    %133 = vmatprep.subr.mxu0 0.0
    %134 = vmatpush2.msra.mxu0 0.0
    %135 = vmatprep.subr.mxu0 0.0
    %136 = vmatpush2.msra.mxu0 0.0
    %137 = vmatprep.subr.mxu0 0.0
    %138 = vmatpush2.msra.mxu0 0.0
    %139 = vmatprep.subr.mxu0 0.0
    %140 = vmatpush2.msra.mxu0 0.0
    %141 = vmatprep.subr.mxu0 0.0
    %142 = vmatpush2.msra.mxu0 0.0
    %143 = vmatprep.subr.mxu0 0.0
    %144 = vmatpush2.msra.mxu0 0.0
    %145 = vmatprep.subr.mxu0 0.0
    %146 = vmatpush2.msra.mxu0 0.0
    %147 = vmatprep.subr.mxu0 0.0
    %148 = vmatpush2.msra.mxu0 0.0
    %149 = vmatprep.subr.mxu0 0.0
    %150 = vmatpush2.msra.mxu0 0.0
    %151 = vmatprep.subr.mxu0 0.0
    %152 = vmatpush2.msra.mxu0 0.0
    %153 = vmatprep.subr.mxu0 0.0
    %154 = vmatpush2.msra.mxu0 0.0
    %155 = vmatprep.subr.mxu0 0.0
    %156 = vmatpush2.msra.mxu0 0.0
    %157 = vmatprep.mubr.f32.mxu0 0.0
    %158 = vmatmul.mubr.f32.gmra.mxu0 %v91
    %v159 = vpop.f32.mrf.mxu0
    %v160 = vadd.f32 0.0, %v159
    %v161 = vpop.f32.mrf.mxu0
    %162 = vdwg.mxu0
    %vm163 = vcmask 130048
    %v165 = vsel %vm163, %v84, 0
    %167 = vmatprep.subr.mxu0 0.0
    %168 = vmatpush1.msra.mxu0 0.0
    %169 = vmatprep.subr.mxu0 0.0
    %170 = vmatpush1.msra.mxu0 0.0
    %171 = vmatprep.subr.mxu0 0.0
    %172 = vmatpush1.msra.mxu0 0.0
    %173 = vmatprep.subr.mxu0 0.0
    %174 = vmatpush1.msra.mxu0 0.0
    %175 = vmatprep.subr.mxu0 0.0
    %176 = vmatpush1.msra.mxu0 0.0
    %177 = vmatprep.subr.mxu0 0.0
    %178 = vmatpush1.msra.mxu0 0.0
    %179 = vmatprep.subr.mxu0 0.0
    %180 = vmatpush1.msra.mxu0 0.0
    %181 = vmatprep.subr.mxu0 0.0
    %182 = vmatpush1.msra.mxu0 0.0
    %183 = vmatprep.subr.mxu0 0.0
    %184 = vmatpush1.msra.mxu0 0.0
    %185 = vmatprep.subr.mxu0 0.0
    %186 = vmatpush1.msra.mxu0 0.0
    %187 = vmatprep.subr.mxu0 0.0
    %188 = vmatpush1.msra.mxu0 0.0
    %189 = vmatprep.subr.mxu0 0.0
    %190 = vmatpush1.msra.mxu0 0.0
    %191 = vmatprep.subr.mxu0 0.0
    %192 = vmatpush1.msra.mxu0 0.0
    %193 = vmatprep.subr.mxu0 0.0
    %194 = vmatpush1.msra.mxu0 0.0
    %195 = vmatprep.subr.mxu0 0.0
    %196 = vmatpush1.msra.mxu0 %v87
    %197 = vmatprep.subr.mxu0 0.0
    %198 = vmatpush1.msra.mxu0 %v86
    %199 = vmatprep.subr.mxu0 0.0
    %200 = vmatpush2.msra.mxu0 0.0
    %201 = vmatprep.subr.mxu0 0.0
    %202 = vmatpush2.msra.mxu0 0.0
    %203 = vmatprep.subr.mxu0 0.0
    %204 = vmatpush2.msra.mxu0 0.0
    %205 = vmatprep.subr.mxu0 0.0
    %206 = vmatpush2.msra.mxu0 0.0
    %207 = vmatprep.subr.mxu0 0.0
    %208 = vmatpush2.msra.mxu0 0.0
    %209 = vmatprep.subr.mxu0 0.0
    %210 = vmatpush2.msra.mxu0 0.0
    %211 = vmatprep.subr.mxu0 0.0
    %212 = vmatpush2.msra.mxu0 0.0
    %213 = vmatprep.subr.mxu0 0.0
    %214 = vmatpush2.msra.mxu0 0.0
    %215 = vmatprep.subr.mxu0 0.0
    %216 = vmatpush2.msra.mxu0 0.0
    %217 = vmatprep.subr.mxu0 0.0
    %218 = vmatpush2.msra.mxu0 0.0
    %219 = vmatprep.subr.mxu0 0.0
    %220 = vmatpush2.msra.mxu0 0.0
    %221 = vmatprep.subr.mxu0 0.0
    %222 = vmatpush2.msra.mxu0 0.0
    %223 = vmatprep.subr.mxu0 0.0
    %224 = vmatpush2.msra.mxu0 0.0
    %225 = vmatprep.subr.mxu0 0.0
    %226 = vmatpush2.msra.mxu0 0.0
    %227 = vmatprep.subr.mxu0 0.0
    %228 = vmatpush2.msra.mxu0 0.0
    %229 = vmatprep.subr.mxu0 0.0
    %230 = vmatpush2.msra.mxu0 0.0
    %231 = vmatprep.mubr.f32.mxu0 0.0
    %232 = vmatmul.mubr.f32.gmra.mxu0 %v165
    %v233 = vpop.f32.mrf.mxu0
    %v234 = vadd.f32 %v160, %v233
    %v235 = vpop.f32.mrf.mxu0
    %236 = vdwg.mxu0
    %v237 = vld [vmem:[%s4] sm:$0x1]
    %v239 = vlaneseq
    %v240 = vshrl.u32 %v239, 7
    %v241 = vsub.s32 0, %v240
    %v242 = vrot.slane %v237, %v241
    %v244 = vadd.f32 %v234, %v242
    %v245 = vmax.f32 %v244, 0.0
    %v246 = vld [vmem:[#allocation8] sm:$0xff]
    %v247 = vld [vmem:[#allocation8 + $0x8] sm:$0xff]
    %v248 = vld [vmem:[#allocation8 + $0x10] sm:$0xff]
    %v249 = vld [vmem:[#allocation8 + $0x18] sm:$0xff]
    %v250 = vld [vmem:[%s6] sm:$0x1]
    %v252 = vlaneseq
    %v253 = vshrl.u32 %v252, 7
    %v254 = vsub.s32 0, %v253
    %v255 = vrot.slane %v250, %v254
    %vm257 = vcmask 261120
    %v259 = vsel %vm257, %v245, 0
    %261 = vmatprep.subr.mxu0 0.0
    %262 = vmatpush1.msra.mxu0 0.0
    %263 = vmatprep.subr.mxu0 0.0
    %264 = vmatpush1.msra.mxu0 0.0
    %265 = vmatprep.subr.mxu0 0.0
    %266 = vmatpush1.msra.mxu0 0.0
    %267 = vmatprep.subr.mxu0 0.0
    %268 = vmatpush1.msra.mxu0 0.0
    %269 = vmatprep.subr.mxu0 0.0
    %270 = vmatpush1.msra.mxu0 0.0
    %271 = vmatprep.subr.mxu0 0.0
    %272 = vmatpush1.msra.mxu0 0.0
    %273 = vmatprep.subr.mxu0 0.0
    %274 = vmatpush1.msra.mxu0 0.0
    %275 = vmatprep.subr.mxu0 0.0
    %276 = vmatpush1.msra.mxu0 0.0
    %277 = vmatprep.subr.mxu0 0.0
    %278 = vmatpush1.msra.mxu0 0.0
    %279 = vmatprep.subr.mxu0 0.0
    %280 = vmatpush1.msra.mxu0 0.0
    %281 = vmatprep.subr.mxu0 0.0
    %282 = vmatpush1.msra.mxu0 0.0
    %283 = vmatprep.subr.mxu0 0.0
    %284 = vmatpush1.msra.mxu0 0.0
    %285 = vmatprep.subr.mxu0 0.0
    %286 = vmatpush1.msra.mxu0 %v249
    %287 = vmatprep.subr.mxu0 0.0
    %288 = vmatpush1.msra.mxu0 %v248
    %289 = vmatprep.subr.mxu0 0.0
    %290 = vmatpush1.msra.mxu0 %v247
    %291 = vmatprep.subr.mxu0 0.0
    %292 = vmatpush1.msra.mxu0 %v246
    %293 = vmatprep.subr.mxu0 0.0
    %294 = vmatpush2.msra.mxu0 0.0
    %295 = vmatprep.subr.mxu0 0.0
    %296 = vmatpush2.msra.mxu0 0.0
    %297 = vmatprep.subr.mxu0 0.0
    %298 = vmatpush2.msra.mxu0 0.0
    %299 = vmatprep.subr.mxu0 0.0
    %300 = vmatpush2.msra.mxu0 0.0
    %301 = vmatprep.subr.mxu0 0.0
    %302 = vmatpush2.msra.mxu0 0.0
    %303 = vmatprep.subr.mxu0 0.0
    %304 = vmatpush2.msra.mxu0 0.0
    %305 = vmatprep.subr.mxu0 0.0
    %306 = vmatpush2.msra.mxu0 0.0
    %307 = vmatprep.subr.mxu0 0.0
    %308 = vmatpush2.msra.mxu0 0.0
    %309 = vmatprep.subr.mxu0 0.0
    %310 = vmatpush2.msra.mxu0 0.0
    %311 = vmatprep.subr.mxu0 0.0
    %312 = vmatpush2.msra.mxu0 0.0
    %313 = vmatprep.subr.mxu0 0.0
    %314 = vmatpush2.msra.mxu0 0.0
    %315 = vmatprep.subr.mxu0 0.0
    %316 = vmatpush2.msra.mxu0 0.0
    %317 = vmatprep.subr.mxu0 0.0
    %318 = vmatpush2.msra.mxu0 0.0
    %319 = vmatprep.subr.mxu0 0.0
    %320 = vmatpush2.msra.mxu0 0.0
    %321 = vmatprep.subr.mxu0 0.0
    %322 = vmatpush2.msra.mxu0 0.0
    %323 = vmatprep.subr.mxu0 0.0
    %324 = vmatpush2.msra.mxu0 0.0
    %325 = vmatprep.mubr.f32.mxu0 0.0
    %326 = vmatmul.mubr.f32.gmra.mxu0 %v259
    %v327 = vpop.f32.mrf.mxu0
    %v328 = vadd.f32 %v255, %v327
    %v329 = vpop.f32.mrf.mxu0
    %330 = vdwg.mxu0
    %v331 = vmax.f32 %v328, 0.0
    %v332 = vld [vmem:[%s7] sm:$0x1]
    %v334 = vlaneseq
    %v335 = vshrl.u32 %v334, 7
    %v336 = vsub.s32 0, %v335
    %v337 = vrot.slane %v332, %v336
    %v339 = vmul.f32 %v331, %v337
    %vm340 = vcmask 254976
    %v341 = vsel %vm340, %v339, 0.0
    %342 = vadd.xlane.f32.xlu0 %v341
    %v343 = vpop.xlane.xlu0 %342
    %s344 = sld [smem:[#allocation2]]
    %v345 = vstv %s344
    %v346 = vadd.f32 %v343, %v345
    %vm347 = vcmask 1024
    %348 = vst.msk [vmem:[%s9] sm:$0x3] %vm347, %v346
    // Predicated region
    $region54: #{tpu_custom_call.1} parent=1 // pred_check
      _
    $region55: #{tpu_custom_call.1} parent=1 // pred_check_branch
      %350 = sbr.rel (0) target = $region57
    $region56: #{tpu_custom_call.1} parent=1 // pred_region
      _
    $region57: #{tpu_custom_call.1} parent=1 // pred_fallthru
      _
    // Predicated region
    $region58: #{tpu_custom_call.1} parent=1 // pred_check
      _
    $region59: #{tpu_custom_call.1} parent=1 // pred_check_branch
      %352 = sbr.rel (0) target = $region61
    $region60: #{tpu_custom_call.1} parent=1 // pred_region
      _
    $region61: #{tpu_custom_call.1} parent=1 // pred_fallthru
      _
    %353 = vsyncpa [#allocation4], 1
    %354 = vsyncpa [#allocation6], 1
    %355 = vsyncpa [#allocation9], 1

// kernel: tpu_custom_call.1
$region0: #{tpu_custom_call.1}
  #allocation0 [shape = 'u32[]', space=smem, size = 0x4, offset = 0x4, fixed_abs, tag = 'smem constant byte address 0x4 - core index']
  #allocation1 [shape = 'u32[144,128]{1,0:T(1,128)}', space=vmem, size = 0x12000, scoped, tag = 'internal scratch']
  #allocation2 [shape = 'f32[1]{0:T(128)S(6)}', space=smem, size = 0x200, scoped, tag = 'scoped memory for tpu_custom_call.1']
  %s0 = inlined_call_operand.vmem [shape: f32[2,16], index: 0, kind: input, shape index: {}]
  %s1 = inlined_call_operand.hbm [shape: f32[2,8], index: 1, kind: input, shape index: {}]
  %s2 = inlined_call_operand.hbm [shape: f32[16,32], index: 2, kind: input, shape index: {}]
  %s3 = inlined_call_operand.hbm [shape: f32[8,32], index: 3, kind: input, shape index: {}]
  %s4 = inlined_call_operand.vmem [shape: f32[1,32], index: 4, kind: input, shape index: {}]
  %s5 = inlined_call_operand.hbm [shape: f32[32,32], index: 5, kind: input, shape index: {}]
  %s6 = inlined_call_operand.vmem [shape: f32[1,32], index: 6, kind: input, shape index: {}]
  %s7 = inlined_call_operand.vmem [shape: f32[1,32], index: 7, kind: input, shape index: {}]
  %s8 = inlined_call_operand.<no memory space> [shape: f32[1], index: 8, kind: input, shape index: {}]
  %s9 = inlined_call_operand.vmem [shape: f32[2,1], index: 9, kind: output, shape index: {}]
  %s10 = sld [smem:[#allocation0]]
  $region62: #{tpu_custom_call.1} parent=0
    _
  %s12 = ssub.s32 1, %s10
  %s13 = scalar_select 0, %s12, %s10
  %14 = sst [smem:[#allocation2]] %s8
  $region1: #{tpu_custom_call.1} parent=0
    #allocation3 [shape = 'u8[1024]{0}', space=vmem, size = 0x400, scoped, tag = 'input window, operand 1, single buffered']
    #allocation4 [shape = 's32[1]{0}', space=sflag, size = 0x4, scoped, tag = 'scoped memory for tpu_custom_call.1']
    #allocation5 [shape = 'u8[8192]{0}', space=vmem, size = 0x2000, scoped, tag = 'input window, operand 2, single buffered']
    #allocation6 [shape = 's32[1]{0}', space=sflag, size = 0x4, scoped, tag = 'scoped memory for tpu_custom_call.1']
    #allocation7 [shape = 'u8[4096]{0}', space=vmem, size = 0x1000, scoped, tag = 'input window, operand 3, single buffered']
    #allocation8 [shape = 'u8[16384]{0}', space=vmem, size = 0x4000, scoped, tag = 'input window, operand 5, single buffered']
    #allocation9 [shape = 's32[1]{0}', space=sflag, size = 0x4, scoped, tag = 'scoped memory for tpu_custom_call.1']
    %15 = vsyncpa [#allocation4], 0
    %16 = vsyncpa [#allocation6], 0
    %17 = vsyncpa [#allocation9], 0
    // Predicated region
    $region2: #{tpu_custom_call.1} parent=1 // pred_check
      _
    $region3: #{tpu_custom_call.1} parent=1 // pred_check_branch
      %19 = sbr.rel (0) target = $region5
    $region4: #{tpu_custom_call.1} parent=1 // pred_region
      _
    $region5: #{tpu_custom_call.1} parent=1 // pred_fallthru
      _
    // Predicated region
    $region6: #{tpu_custom_call.1} parent=1 // pred_check
      _
    $region7: #{tpu_custom_call.1} parent=1 // pred_check_branch
      %21 = sbr.rel (0) target = $region9
    $region8: #{tpu_custom_call.1} parent=1 // pred_region
      %s23 = ssub.s32 32, 32
      %24 = vsyncadd [#allocation4], %s23
      %s26 = sshll.u32 [#allocation3], 4
      %s27 = int_to_ptr.vmem [resolvable:$true] %s26
      %29 = dma.hbm_to_vmem [thread:$0]  %s1, 32, %s27, [#allocation4]
    $region9: #{tpu_custom_call.1} parent=1 // pred_fallthru
      _
    // Predicated region
    $region10: #{tpu_custom_call.1} parent=1 // pred_check
      _
    $region11: #{tpu_custom_call.1} parent=1 // pred_check_branch
      %31 = sbr.rel (0) target = $region13
    $region12: #{tpu_custom_call.1} parent=1 // pred_region
      %s33 = ssub.s32 256, 256
      %34 = vsyncadd [#allocation6], %s33
      %s35 = sshll.u32 [#allocation5], 4
      %s36 = int_to_ptr.vmem [resolvable:$true] %s35
      %41 = dma.hbm_to_vmem [thread:$0]  %s2, 256, %s36, [#allocation6], 128, 128, 8
    $region13: #{tpu_custom_call.1} parent=1 // pred_fallthru
      _
    // Predicated region
    $region14: #{tpu_custom_call.1} parent=1 // pred_check
      _
    $region15: #{tpu_custom_call.1} parent=1 // pred_check_branch
      %43 = sbr.rel (0) target = $region17
    $region16: #{tpu_custom_call.1} parent=1 // pred_region
      %s45 = ssub.s32 128, 128
      %46 = vsyncadd [#allocation6], %s45
      %s48 = sshll.u32 [#allocation7], 4
      %s49 = int_to_ptr.vmem [resolvable:$true] %s48
      %51 = dma.hbm_to_vmem [thread:$0]  %s3, 128, %s49, [#allocation6]
    $region17: #{tpu_custom_call.1} parent=1 // pred_fallthru
      _
    // Predicated region
    $region18: #{tpu_custom_call.1} parent=1 // pred_check
      _
    $region19: #{tpu_custom_call.1} parent=1 // pred_check_branch
      %53 = sbr.rel (0) target = $region21
    $region20: #{tpu_custom_call.1} parent=1 // pred_region
      _
    $region21: #{tpu_custom_call.1} parent=1 // pred_fallthru
      _
    // Predicated region
    $region22: #{tpu_custom_call.1} parent=1 // pred_check
      _
    $region23: #{tpu_custom_call.1} parent=1 // pred_check_branch
      %55 = sbr.rel (0) target = $region25
    $region24: #{tpu_custom_call.1} parent=1 // pred_region
      %s57 = ssub.s32 512, 512
      %58 = vsyncadd [#allocation9], %s57
      %s59 = sshll.u32 [#allocation8], 4
      %s60 = int_to_ptr.vmem [resolvable:$true] %s59
      %65 = dma.hbm_to_vmem [thread:$0]  %s5, 512, %s60, [#allocation9], 128, 128, 8
    $region25: #{tpu_custom_call.1} parent=1 // pred_fallthru
      _
    // Predicated region
    $region26: #{tpu_custom_call.1} parent=1 // pred_check
      _
    $region27: #{tpu_custom_call.1} parent=1 // pred_check_branch
      %67 = sbr.rel (0) target = $region29
    $region28: #{tpu_custom_call.1} parent=1 // pred_region
      _
    $region29: #{tpu_custom_call.1} parent=1 // pred_fallthru
      _
    // Predicated region
    $region30: #{tpu_custom_call.1} parent=1 // pred_check
      _
    $region31: #{tpu_custom_call.1} parent=1 // pred_check_branch
      %69 = sbr.rel (0) target = $region33
    $region32: #{tpu_custom_call.1} parent=1 // pred_region
      _
    $region33: #{tpu_custom_call.1} parent=1 // pred_fallthru
      _
    // Predicated region
    $region34: #{tpu_custom_call.1} parent=1 // pred_check
      _
    $region35: #{tpu_custom_call.1} parent=1 // pred_check_branch
      %71 = sbr.rel (0) target = $region37
    $region36: #{tpu_custom_call.1} parent=1 // pred_region
      _
    $region37: #{tpu_custom_call.1} parent=1 // pred_fallthru
      _
    // Predicated region
    $region38: #{tpu_custom_call.1} parent=1 // pred_check
      _
    $region39: #{tpu_custom_call.1} parent=1 // pred_check_branch
      %73 = sbr.rel (0) target = $region41
    $region40: #{tpu_custom_call.1} parent=1 // pred_region
      %74 = dma.done [#allocation4], 32
    $region41: #{tpu_custom_call.1} parent=1 // pred_fallthru
      _
    // Predicated region
    $region42: #{tpu_custom_call.1} parent=1 // pred_check
      _
    $region43: #{tpu_custom_call.1} parent=1 // pred_check_branch
      %76 = sbr.rel (0) target = $region45
    $region44: #{tpu_custom_call.1} parent=1 // pred_region
      %77 = dma.done [#allocation6], 256
    $region45: #{tpu_custom_call.1} parent=1 // pred_fallthru
      _
    // Predicated region
    $region46: #{tpu_custom_call.1} parent=1 // pred_check
      _
    $region47: #{tpu_custom_call.1} parent=1 // pred_check_branch
      %79 = sbr.rel (0) target = $region49
    $region48: #{tpu_custom_call.1} parent=1 // pred_region
      %80 = dma.done [#allocation6], 128
    $region49: #{tpu_custom_call.1} parent=1 // pred_fallthru
      _
    // Predicated region
    $region50: #{tpu_custom_call.1} parent=1 // pred_check
      _
    $region51: #{tpu_custom_call.1} parent=1 // pred_check_branch
      %82 = sbr.rel (0) target = $region53
    $region52: #{tpu_custom_call.1} parent=1 // pred_region
      %83 = dma.done [#allocation9], 512
    $region53: #{tpu_custom_call.1} parent=1 // pred_fallthru
      _
    %v84 = vld [vmem:[%s0] sm:$0x3]
    %v85 = vld [vmem:[#allocation3] sm:$0x3]
    %v86 = vld [vmem:[#allocation5] sm:$0xff]
    %v87 = vld [vmem:[#allocation5 + $0x8] sm:$0xff]
    %v88 = vld [vmem:[#allocation7] sm:$0xff]
    %vm89 = vcmask 64512
    %v91 = vsel %vm89, %v85, 0
    %93 = vmatprep.subr.mxu0 0.0
    %94 = vmatpush1.msra.mxu0 0.0
    %95 = vmatprep.subr.mxu0 0.0
    %96 = vmatpush1.msra.mxu0 0.0
    %97 = vmatprep.subr.mxu0 0.0
    %98 = vmatpush1.msra.mxu0 0.0
    %99 = vmatprep.subr.mxu0 0.0
    %100 = vmatpush1.msra.mxu0 0.0
    %101 = vmatprep.subr.mxu0 0.0
    %102 = vmatpush1.msra.mxu0 0.0
    %103 = vmatprep.subr.mxu0 0.0
    %104 = vmatpush1.msra.mxu0 0.0
    %105 = vmatprep.subr.mxu0 0.0
    %106 = vmatpush1.msra.mxu0 0.0
    %107 = vmatprep.subr.mxu0 0.0
    %108 = vmatpush1.msra.mxu0 0.0
    %109 = vmatprep.subr.mxu0 0.0
    %110 = vmatpush1.msra.mxu0 0.0
    %111 = vmatprep.subr.mxu0 0.0
    %112 = vmatpush1.msra.mxu0 0.0
    %113 = vmatprep.subr.mxu0 0.0
    %114 = vmatpush1.msra.mxu0 0.0
    %115 = vmatprep.subr.mxu0 0.0
    %116 = vmatpush1.msra.mxu0 0.0
    %117 = vmatprep.subr.mxu0 0.0
    %118 = vmatpush1.msra.mxu0 0.0
    %119 = vmatprep.subr.mxu0 0.0
    %120 = vmatpush1.msra.mxu0 0.0
    %121 = vmatprep.subr.mxu0 0.0
    %122 = vmatpush1.msra.mxu0 0.0
    %123 = vmatprep.subr.mxu0 0.0
    %124 = vmatpush1.msra.mxu0 %v88
    %125 = vmatprep.subr.mxu0 0.0
    %126 = vmatpush2.msra.mxu0 0.0
    %127 = vmatprep.subr.mxu0 0.0
    %128 = vmatpush2.msra.mxu0 0.0
    %129 = vmatprep.subr.mxu0 0.0
    %130 = vmatpush2.msra.mxu0 0.0
    %131 = vmatprep.subr.mxu0 0.0
    %132 = vmatpush2.msra.mxu0 0.0
    %133 = vmatprep.subr.mxu0 0.0
    %134 = vmatpush2.msra.mxu0 0.0
    %135 = vmatprep.subr.mxu0 0.0
    %136 = vmatpush2.msra.mxu0 0.0
    %137 = vmatprep.subr.mxu0 0.0
    %138 = vmatpush2.msra.mxu0 0.0
    %139 = vmatprep.subr.mxu0 0.0
    %140 = vmatpush2.msra.mxu0 0.0
    %141 = vmatprep.subr.mxu0 0.0
    %142 = vmatpush2.msra.mxu0 0.0
    %143 = vmatprep.subr.mxu0 0.0
    %144 = vmatpush2.msra.mxu0 0.0
    %145 = vmatprep.subr.mxu0 0.0
    %146 = vmatpush2.msra.mxu0 0.0
    %147 = vmatprep.subr.mxu0 0.0
    %148 = vmatpush2.msra.mxu0 0.0
    %149 = vmatprep.subr.mxu0 0.0
    %150 = vmatpush2.msra.mxu0 0.0
    %151 = vmatprep.subr.mxu0 0.0
    %152 = vmatpush2.msra.mxu0 0.0
    %153 = vmatprep.subr.mxu0 0.0
    %154 = vmatpush2.msra.mxu0 0.0
    %155 = vmatprep.subr.mxu0 0.0
    %156 = vmatpush2.msra.mxu0 0.0
    %157 = vmatprep.mubr.f32.mxu0 0.0
    %158 = vmatmul.mubr.f32.gmra.mxu0 %v91
    %v159 = vpop.f32.mrf.mxu0
    %v160 = vadd.f32 0.0, %v159
    %v161 = vpop.f32.mrf.mxu0
    %162 = vdwg.mxu0
    %vm163 = vcmask 130048
    %v165 = vsel %vm163, %v84, 0
    %167 = vmatprep.subr.mxu0 0.0
    %168 = vmatpush1.msra.mxu0 0.0
    %169 = vmatprep.subr.mxu0 0.0
    %170 = vmatpush1.msra.mxu0 0.0
    %171 = vmatprep.subr.mxu0 0.0
    %172 = vmatpush1.msra.mxu0 0.0
    %173 = vmatprep.subr.mxu0 0.0
    %174 = vmatpush1.msra.mxu0 0.0
    %175 = vmatprep.subr.mxu0 0.0
    %176 = vmatpush1.msra.mxu0 0.0
    %177 = vmatprep.subr.mxu0 0.0
    %178 = vmatpush1.msra.mxu0 0.0
    %179 = vmatprep.subr.mxu0 0.0
    %180 = vmatpush1.msra.mxu0 0.0
    %181 = vmatprep.subr.mxu0 0.0
    %182 = vmatpush1.msra.mxu0 0.0
    %183 = vmatprep.subr.mxu0 0.0
    %184 = vmatpush1.msra.mxu0 0.0
    %185 = vmatprep.subr.mxu0 0.0
    %186 = vmatpush1.msra.mxu0 0.0
    %187 = vmatprep.subr.mxu0 0.0
    %188 = vmatpush1.msra.mxu0 0.0
    %189 = vmatprep.subr.mxu0 0.0
    %190 = vmatpush1.msra.mxu0 0.0
    %191 = vmatprep.subr.mxu0 0.0
    %192 = vmatpush1.msra.mxu0 0.0
    %193 = vmatprep.subr.mxu0 0.0
    %194 = vmatpush1.msra.mxu0 0.0
    %195 = vmatprep.subr.mxu0 0.0
    %196 = vmatpush1.msra.mxu0 %v87
    %197 = vmatprep.subr.mxu0 0.0
    %198 = vmatpush1.msra.mxu0 %v86
    %199 = vmatprep.subr.mxu0 0.0
    %200 = vmatpush2.msra.mxu0 0.0
    %201 = vmatprep.subr.mxu0 0.0
    %202 = vmatpush2.msra.mxu0 0.0
    %203 = vmatprep.subr.mxu0 0.0
    %204 = vmatpush2.msra.mxu0 0.0
    %205 = vmatprep.subr.mxu0 0.0
    %206 = vmatpush2.msra.mxu0 0.0
    %207 = vmatprep.subr.mxu0 0.0
    %208 = vmatpush2.msra.mxu0 0.0
    %209 = vmatprep.subr.mxu0 0.0
    %210 = vmatpush2.msra.mxu0 0.0
    %211 = vmatprep.subr.mxu0 0.0
    %212 = vmatpush2.msra.mxu0 0.0
    %213 = vmatprep.subr.mxu0 0.0
    %214 = vmatpush2.msra.mxu0 0.0
    %215 = vmatprep.subr.mxu0 0.0
    %216 = vmatpush2.msra.mxu0 0.0
    %217 = vmatprep.subr.mxu0 0.0
    %218 = vmatpush2.msra.mxu0 0.0
    %219 = vmatprep.subr.mxu0 0.0
    %220 = vmatpush2.msra.mxu0 0.0
    %221 = vmatprep.subr.mxu0 0.0
    %222 = vmatpush2.msra.mxu0 0.0
    %223 = vmatprep.subr.mxu0 0.0
    %224 = vmatpush2.msra.mxu0 0.0
    %225 = vmatprep.subr.mxu0 0.0
    %226 = vmatpush2.msra.mxu0 0.0
    %227 = vmatprep.subr.mxu0 0.0
    %228 = vmatpush2.msra.mxu0 0.0
    %229 = vmatprep.subr.mxu0 0.0
    %230 = vmatpush2.msra.mxu0 0.0
    %231 = vmatprep.mubr.f32.mxu0 0.0
    %232 = vmatmul.mubr.f32.gmra.mxu0 %v165
    %v233 = vpop.f32.mrf.mxu0
    %v234 = vadd.f32 %v160, %v233
    %v235 = vpop.f32.mrf.mxu0
    %236 = vdwg.mxu0
    %v237 = vld [vmem:[%s4] sm:$0x1]
    %v239 = vlaneseq
    %v240 = vshrl.u32 %v239, 7
    %v241 = vsub.s32 0, %v240
    %v242 = vrot.slane %v237, %v241
    %v244 = vadd.f32 %v234, %v242
    %v245 = vmax.f32 %v244, 0.0
    %v246 = vld [vmem:[#allocation8] sm:$0xff]
    %v247 = vld [vmem:[#allocation8 + $0x8] sm:$0xff]
    %v248 = vld [vmem:[#allocation8 + $0x10] sm:$0xff]
    %v249 = vld [vmem:[#allocation8 + $0x18] sm:$0xff]
    %v250 = vld [vmem:[%s6] sm:$0x1]
    %v252 = vlaneseq
    %v253 = vshrl.u32 %v252, 7
    %v254 = vsub.s32 0, %v253
    %v255 = vrot.slane %v250, %v254
    %vm257 = vcmask 261120
    %v259 = vsel %vm257, %v245, 0
    %261 = vmatprep.subr.mxu0 0.0
    %262 = vmatpush1.msra.mxu0 0.0
    %263 = vmatprep.subr.mxu0 0.0
    %264 = vmatpush1.msra.mxu0 0.0
    %265 = vmatprep.subr.mxu0 0.0
    %266 = vmatpush1.msra.mxu0 0.0
    %267 = vmatprep.subr.mxu0 0.0
    %268 = vmatpush1.msra.mxu0 0.0
    %269 = vmatprep.subr.mxu0 0.0
    %270 = vmatpush1.msra.mxu0 0.0
    %271 = vmatprep.subr.mxu0 0.0
    %272 = vmatpush1.msra.mxu0 0.0
    %273 = vmatprep.subr.mxu0 0.0
    %274 = vmatpush1.msra.mxu0 0.0
    %275 = vmatprep.subr.mxu0 0.0
    %276 = vmatpush1.msra.mxu0 0.0
    %277 = vmatprep.subr.mxu0 0.0
    %278 = vmatpush1.msra.mxu0 0.0
    %279 = vmatprep.subr.mxu0 0.0
    %280 = vmatpush1.msra.mxu0 0.0
    %281 = vmatprep.subr.mxu0 0.0
    %282 = vmatpush1.msra.mxu0 0.0
    %283 = vmatprep.subr.mxu0 0.0
    %284 = vmatpush1.msra.mxu0 0.0
    %285 = vmatprep.subr.mxu0 0.0
    %286 = vmatpush1.msra.mxu0 %v249
    %287 = vmatprep.subr.mxu0 0.0
    %288 = vmatpush1.msra.mxu0 %v248
    %289 = vmatprep.subr.mxu0 0.0
    %290 = vmatpush1.msra.mxu0 %v247
    %291 = vmatprep.subr.mxu0 0.0
    %292 = vmatpush1.msra.mxu0 %v246
    %293 = vmatprep.subr.mxu0 0.0
    %294 = vmatpush2.msra.mxu0 0.0
    %295 = vmatprep.subr.mxu0 0.0
    %296 = vmatpush2.msra.mxu0 0.0
    %297 = vmatprep.subr.mxu0 0.0
    %298 = vmatpush2.msra.mxu0 0.0
    %299 = vmatprep.subr.mxu0 0.0
    %300 = vmatpush2.msra.mxu0 0.0
    %301 = vmatprep.subr.mxu0 0.0
    %302 = vmatpush2.msra.mxu0 0.0
    %303 = vmatprep.subr.mxu0 0.0
    %304 = vmatpush2.msra.mxu0 0.0
    %305 = vmatprep.subr.mxu0 0.0
    %306 = vmatpush2.msra.mxu0 0.0
    %307 = vmatprep.subr.mxu0 0.0
    %308 = vmatpush2.msra.mxu0 0.0
    %309 = vmatprep.subr.mxu0 0.0
    %310 = vmatpush2.msra.mxu0 0.0
    %311 = vmatprep.subr.mxu0 0.0
    %312 = vmatpush2.msra.mxu0 0.0
    %313 = vmatprep.subr.mxu0 0.0
    %314 = vmatpush2.msra.mxu0 0.0
    %315 = vmatprep.subr.mxu0 0.0
    %316 = vmatpush2.msra.mxu0 0.0
    %317 = vmatprep.subr.mxu0 0.0
    %318 = vmatpush2.msra.mxu0 0.0
    %319 = vmatprep.subr.mxu0 0.0
    %320 = vmatpush2.msra.mxu0 0.0
    %321 = vmatprep.subr.mxu0 0.0
    %322 = vmatpush2.msra.mxu0 0.0
    %323 = vmatprep.subr.mxu0 0.0
    %324 = vmatpush2.msra.mxu0 0.0
    %325 = vmatprep.mubr.f32.mxu0 0.0
    %326 = vmatmul.mubr.f32.gmra.mxu0 %v259
    %v327 = vpop.f32.mrf.mxu0
    %v328 = vadd.f32 %v255, %v327
    %v329 = vpop.f32.mrf.mxu0
    %330 = vdwg.mxu0
    %v331 = vmax.f32 %v328, 0.0
    %v332 = vld [vmem:[%s7] sm:$0x1]
    %v334 = vlaneseq
    %v335 = vshrl.u32 %v334, 7
    %v336 = vsub.s32 0, %v335
    %v337 = vrot.slane %v332, %v336
    %v339 = vmul.f32 %v331, %v337
    %vm340 = vcmask 254976
    %v341 = vsel %vm340, %v339, 0.0
    %342 = vadd.xlane.f32.xlu0 %v341
    %v343 = vpop.xlane.xlu0 %342
    %s344 = sld [smem:[#allocation2]]
    %v345 = vstv %s344
    %v346 = vadd.f32 %v343, %v345
    %vm347 = vcmask 1024
    %348 = vst.msk [vmem:[%s9] sm:$0x3] %vm347, %v346
    // Predicated region
    $region54: #{tpu_custom_call.1} parent=1 // pred_check
      _
    $region55: #{tpu_custom_call.1} parent=1 // pred_check_branch
      %350 = sbr.rel (0) target = $region57
    $region56: #{tpu_custom_call.1} parent=1 // pred_region
      _
    $region57: #{tpu_custom_call.1} parent=1 // pred_fallthru
      _
    // Predicated region
    $region58: #{tpu_custom_call.1} parent=1 // pred_check
      _
    $region59: #{tpu_custom_call.1} parent=1 // pred_check_branch
      %352 = sbr.rel (0) target = $region61
    $region60: #{tpu_custom_call.1} parent=1 // pred_region
      _
    $region61: #{tpu_custom_call.1} parent=1 // pred_fallthru
      _
    %353 = vsyncpa [#allocation4], 1
    %354 = vsyncpa [#allocation6], 1
    %355 = vsyncpa [#allocation9], 1

</llo_original>
